<compile_context>
chip_gen: v5e
topology: v5e:2x2
jax: 0.10.0
libtpu: 0.0.40
codegen_flags: <defaults>
</compile_context>

<pallas_src>
import functools

import jax
import jax.numpy as jnp
from jax import lax
from jax.experimental import pallas as pl
from jax.experimental.pallas import tpu as pltpu


# ----------------------------------------------------------------------------
# Kernels
# ----------------------------------------------------------------------------
def _bn_onepass_kernel(x_ref, o_ref):
    """Block = (N, C_TILE, H*W): full per-channel data resident -> one pass."""
    n, _, l = x_ref.shape
    inv_count = 1.0 / float(n * l)

    x = x_ref[...].astype(jnp.float32)
    # Batch-axis reduce first (VPU vreg adds), then a single cross-lane (XLU)
    # reduce on the (C_TILE, L) partials: XLU work drops by a factor of N.
    s_l = jnp.sum(x, axis=0)                     # (C_TILE, L)
    ss_l = jnp.sum(x * x, axis=0)                # (C_TILE, L)
    s = jnp.sum(s_l, axis=1, keepdims=True)      # (C_TILE, 1)
    ss = jnp.sum(ss_l, axis=1, keepdims=True)    # (C_TILE, 1)

    mean = s * inv_count
    var = ss * inv_count - mean * mean           # E[x^2] - mean^2 (f32)
    inv_std = lax.rsqrt(var)

    # Re-read x_ref for the store instead of keeping a centered full-tile
    # temporary (or an f32 copy) live across the whole kernel.
    o_ref[...] = ((x_ref[...].astype(jnp.float32) - mean[None])
                  * inv_std[None]).astype(o_ref.dtype)


def _bn_stats_kernel(x_ref, mean_ref, inv_std_ref, sum_ref, sumsq_ref, *,
                     inv_count, l_total, ragged):
    """Accumulate per-channel sum / sum-of-squares over L-chunks (f32)."""
    k = pl.program_id(1)

    @pl.when(k == 0)
    def _():
        sum_ref[...] = jnp.zeros_like(sum_ref)
        sumsq_ref[...] = jnp.zeros_like(sumsq_ref)

    n, c_tile, l_chunk = x_ref.shape
    x = x_ref[...].astype(jnp.float32)           # (N, C_TILE, L_CHUNK)
    if ragged:
        # Mask lanes past the true end of the row (trailing partial chunk).
        lane = lax.broadcasted_iota(jnp.int32, (n, c_tile, l_chunk), 2)
        x = jnp.where(k * l_chunk + lane < l_total, x, 0.0)

    # Batch axis first (VPU adds), then one cross-lane (XLU) reduce.
    s_l = jnp.sum(x, axis=0)
    ss_l = jnp.sum(x * x, axis=0)
    sum_ref[...] += jnp.sum(s_l, axis=1, keepdims=True)
    sumsq_ref[...] += jnp.sum(ss_l, axis=1, keepdims=True)

    @pl.when(k == pl.num_programs(1) - 1)
    def _():
        mean = sum_ref[...] * inv_count                      # (C_TILE, 1)
        var = sumsq_ref[...] * inv_count - mean * mean
        mean_ref[...] = mean
        inv_std_ref[...] = lax.rsqrt(var)


def _bn_norm_kernel(x_ref, mean_ref, inv_std_ref, o_ref):
    """Normalize one lane-dense (N, C_TILE, L_CHUNK) block."""
    mean = mean_ref[...][None]                   # (1, C_TILE, 1)
    inv_std = inv_std_ref[...][None]
    o_ref[...] = ((x_ref[...].astype(jnp.float32) - mean)
                  * inv_std).astype(o_ref.dtype)


# ----------------------------------------------------------------------------
# Tiling helpers
# ----------------------------------------------------------------------------
def _sublane_multiple(dtype):
    return {4: 8, 2: 16, 1: 32}.get(jnp.dtype(dtype).itemsize, 8)


def _legal_c_tiles(C, sub):
    """Divisors of C that are sublane-aligned, plus the full C (always legal)."""
    return sorted(d for d in range(1, C + 1)
                  if C % d == 0 and (d == C or d % sub == 0))


def _block_footprint_bytes(n, c, l, itemsize):
    """VMEM bytes an (n, c, l) block really costs inside these kernels:
    2x double-buffered input + 2x double-buffered output + f32 working value +
    one tile-sized f32 transient (x*x / centered) + batch-reduced partials."""
    io = 4 * n * c * l * itemsize
    work = 2 * n * c * l * 4
    partials = 2 * c * l * 4
    return io + work + partials


def _vmem_budget_and_limit():
    """Per-generation block-footprint budget and explicit scoped-VMEM limit."""
    try:
        cap = int(getattr(pltpu.get_tpu_info(), "vmem_capacity_bytes", 0) or 0)
    except Exception:
        cap = 0
    if cap <= 0:
        cap = 64 * 1024 * 1024       # conservative default: v7x per-core VMEM
    budget = min(cap // 2, 48 * 1024 * 1024)
    limit = max(min((cap * 3) // 4, 100 * 1024 * 1024),
                budget + 8 * 1024 * 1024)
    return budget, limit


def _choose_one_pass_c_tile(N, C, L, itemsize, sub, budget):
    c_cands = _legal_c_tiles(C, sub)
    fitting = [c for c in c_cands
               if _block_footprint_bytes(N, c, L, itemsize) <= budget]
    if not fitting:
        return None
    # Prefer >=4 grid steps (cross-block pipelining; both v7x TensorCores on
    # the "parallel" axis), then >=2, else whatever fits; largest within class.
    for min_steps in (4, 2, 1):
        ok = [c for c in fitting if C // c >= min_steps]
        if ok:
            return max(ok)
    return max(fitting)


def _choose_two_pass_tiles(N, C, L, itemsize, sub, budget):
    """Jointly pick (c_tile, l_chunk): lane-dense l_chunk (multiple of 128,
    larger preferred), remaining budget spent on the channel tile."""
    c_cands = _legal_c_tiles(C, sub)
    c_min = c_cands[0]

    if L < 128:
        l_cands = [L]                           # full (narrow) lane dim: legal
    else:
        dividing = [d for d in range(128, L + 1, 128) if L % d == 0]
        nondividing = [m for m in (128, 256, 512, 1024, 2048, 4096) if m <= L]
        l_cands = sorted(set(dividing + nondividing))

    best = None
    for l in l_cands:
        fitting = [c for c in c_cands
                   if _block_footprint_bytes(N, c, l, itemsize) <= budget]
        if not fitting:
            continue
        c = max(fitting)
        # Prefer lane-dense (>=512) chunks, then dividing chunks, then size.
        score = (min(l, 512), L % l == 0, N * c * l)
        if best is None or score > best[0]:
            best = (score, c, l)
    if best is None:
        # Nothing fits even at the minimum tile; rely on vmem_limit headroom.
        return c_min, min(l_cands)
    return best[1], best[2]


# ----------------------------------------------------------------------------
# Pallas-call wrappers
# ----------------------------------------------------------------------------
def _bn_one_pass(x3, c_tile, vmem_limit):
    N, C, L = x3.shape
    return pl.pallas_call(
        _bn_onepass_kernel,
        out_shape=jax.ShapeDtypeStruct((N, C, L), x3.dtype),
        grid=(C // c_tile,),
        in_specs=[pl.BlockSpec((N, c_tile, L), lambda i: (0, i, 0))],
        out_specs=pl.BlockSpec((N, c_tile, L), lambda i: (0, i, 0)),
        compiler_params=pltpu.CompilerParams(
            dimension_semantics=("parallel",),
            vmem_limit_bytes=int(vmem_limit)),
        cost_estimate=pl.CostEstimate(
            flops=int(5 * N * C * L),
            transcendentals=int(C),
            bytes_accessed=int(2 * x3.nbytes)),
    )(x3)


def _bn_two_pass(x3, c_tile, l_chunk, vmem_limit):
    N, C, L = x3.shape
    num_c = C // c_tile
    num_l = (L + l_chunk - 1) // l_chunk
    ragged = (L % l_chunk) != 0
    inv_count = 1.0 / float(N * L)

    # Pass 1: per-channel mean and inv_std (f32 accumulation in VMEM scratch).
    # TODO(synk): on v7x, if profiling shows exposed DMA, add
    # pipeline_mode=pl.Buffered(3) on the x BlockSpecs below.
    mean, inv_std = pl.pallas_call(
        functools.partial(_bn_stats_kernel, inv_count=inv_count,
                          l_total=L, ragged=ragged),
        out_shape=(jax.ShapeDtypeStruct((C, 1), jnp.float32),
                   jax.ShapeDtypeStruct((C, 1), jnp.float32)),
        grid=(num_c, num_l),
        in_specs=[pl.BlockSpec((N, c_tile, l_chunk), lambda i, k: (0, i, k))],
        out_specs=(pl.BlockSpec((c_tile, 1), lambda i, k: (i, 0)),
                   pl.BlockSpec((c_tile, 1), lambda i, k: (i, 0))),
        scratch_shapes=[pltpu.VMEM((c_tile, 1), jnp.float32),
                        pltpu.VMEM((c_tile, 1), jnp.float32)],
        compiler_params=pltpu.CompilerParams(
            dimension_semantics=("parallel", "arbitrary"),
            vmem_limit_bytes=int(vmem_limit)),
        cost_estimate=pl.CostEstimate(
            flops=int(3 * N * C * L),
            transcendentals=int(C),
            bytes_accessed=int(x3.nbytes)),
    )(x3)

    # Pass 2: normalize (both grid axes independent -> fully parallel).
    return pl.pallas_call(
        _bn_norm_kernel,
        out_shape=jax.ShapeDtypeStruct((N, C, L), x3.dtype),
        grid=(num_c, num_l),
        in_specs=[pl.BlockSpec((N, c_tile, l_chunk), lambda i, k: (0, i, k)),
                  pl.BlockSpec((c_tile, 1), lambda i, k: (i, 0)),
                  pl.BlockSpec((c_tile, 1), lambda i, k: (i, 0))],
        out_specs=pl.BlockSpec((N, c_tile, l_chunk), lambda i, k: (0, i, k)),
        compiler_params=pltpu.CompilerParams(
            dimension_semantics=("parallel", "parallel"),
            vmem_limit_bytes=int(vmem_limit)),
        cost_estimate=pl.CostEstimate(
            flops=int(2 * N * C * L),
            transcendentals=0,
            bytes_accessed=int(2 * x3.nbytes)),
    )(x3, mean, inv_std)


def batchnorm2d_forward(x, *, force_two_pass=False):
    """x: NCHW float array. Returns (x - mean_c) / sqrt(var_c), NCHW."""
    N, C, H, W = x.shape
    L = H * W
    # Free reshape: contiguous NCHW is already (N, C, H*W); no transposes.
    x3 = x.reshape(N, C, L)

    itemsize = jnp.dtype(x.dtype).itemsize
    sub = _sublane_multiple(x.dtype)
    budget, vmem_limit = _vmem_budget_and_limit()

    c_tile = None if force_two_pass else _choose_one_pass_c_tile(
        N, C, L, itemsize, sub, budget)
    if c_tile is not None:
        out3 = _bn_one_pass(x3, c_tile, vmem_limit)
    else:
        c2, l_chunk = _choose_two_pass_tiles(N, C, L, itemsize, sub, budget)
        out3 = _bn_two_pass(x3, c2, l_chunk, vmem_limit)

    return out3.reshape(N, C, H, W)


if __name__ == "__main__":
    key = jax.random.PRNGKey(0)
    N, C, H, W = 2, 4, 16, 16

    # Deterministic "module parameters" from __init__ (unused in forward).
    beta = jnp.zeros((1, C, 1, 1), jnp.float32)          # noqa: F841
    gama = jnp.ones((1, C, 1, 1), jnp.float32)           # noqa: F841
    running_mean = jnp.zeros((1, C, 1, 1), jnp.float32)  # noqa: F841
    running_var = jnp.ones((1, C, 1, 1), jnp.float32)    # noqa: F841
    mount = 0.1                                          # noqa: F841

    def ref_bn(v):
        m = jnp.mean(v, axis=(0, 2, 3), keepdims=True)
        s = jnp.mean((v - m) ** 2, axis=(0, 2, 3), keepdims=True)
        return (v - m) / jnp.sqrt(s)

    x = jax.random.normal(key, (N, C, H, W), dtype=jnp.float32)

    # One-pass (fits-in-VMEM) path.
    out = jax.block_until_ready(batchnorm2d_forward(x))
    assert out.shape == x.shape and out.dtype == x.dtype
    assert jnp.max(jnp.abs(out - ref_bn(x))) < 1e-5

    # Two-pass (chunked stats + normalize) path, exercised explicitly.
    out2 = jax.block_until_ready(batchnorm2d_forward(x, force_two_pass=True))
    assert out2.shape == x.shape and out2.dtype == x.dtype
    assert jnp.max(jnp.abs(out2 - ref_bn(x))) < 1e-5

    # Ragged-L two-pass path (L = 14*14 = 196, not a multiple of 128).
    xr = jax.random.normal(jax.random.PRNGKey(1), (2, 4, 14, 14), jnp.float32)
    out3 = jax.block_until_ready(batchnorm2d_forward(xr, force_two_pass=True))
    assert jnp.max(jnp.abs(out3 - ref_bn(xr))) < 1e-5

    print("KERNEL_OK")
</pallas_src>

<mosaic_0001>
module attributes {stable_mosaic.version = 11 : i64} {
  func.func @_bn_onepass_kernel(%arg0: i32, %arg1: memref<2x4x256xf32, #tpu.memory_space<vmem>>, %arg2: memref<2x4x256xf32, #tpu.memory_space<vmem>>) attributes {dimension_semantics = [#tpu.dimension_semantics<parallel>], iteration_bounds = array<i64: 1>, scalar_prefetch = 0 : i64, scratch_operands = 0 : i64, tpu.core_type = #tpu.core_type<tc>, window_params = [{transform_indices = @transform_0, window_bounds = array<i64: 2, 4, 256>}, {transform_indices = @transform_1, window_bounds = array<i64: 2, 4, 256>}]} {
    %c0 = arith.constant 0 : index
    %c0_0 = arith.constant 0 : index
    %c0_1 = arith.constant 0 : index
    %0 = vector.load %arg1[%c0, %c0_0, %c0_1] : memref<2x4x256xf32, #tpu.memory_space<vmem>>, vector<2x4x256xf32>
    %cst = arith.constant dense<0.000000e+00> : vector<4x256xf32>
    %1 = vector.multi_reduction <add>, %0, %cst [0] : vector<2x4x256xf32> to vector<4x256xf32>
    %2 = arith.mulf %0, %0 : vector<2x4x256xf32>
    %cst_2 = arith.constant dense<0.000000e+00> : vector<4x256xf32>
    %3 = vector.multi_reduction <add>, %2, %cst_2 [0] : vector<2x4x256xf32> to vector<4x256xf32>
    %cst_3 = arith.constant dense<0.000000e+00> : vector<4xf32>
    %4 = vector.multi_reduction <add>, %1, %cst_3 [1] : vector<4x256xf32> to vector<4xf32>
    %5 = vector.shape_cast %4 : vector<4xf32> to vector<4x1xf32>
    %cst_4 = arith.constant dense<0.000000e+00> : vector<4xf32>
    %6 = vector.multi_reduction <add>, %3, %cst_4 [1] : vector<4x256xf32> to vector<4xf32>
    %7 = vector.shape_cast %6 : vector<4xf32> to vector<4x1xf32>
    %cst_5 = arith.constant 0.001953125 : f32
    %8 = vector.broadcast %cst_5 : f32 to vector<4x1xf32>
    %9 = arith.mulf %5, %8 : vector<4x1xf32>
    %cst_6 = arith.constant 0.001953125 : f32
    %10 = vector.broadcast %cst_6 : f32 to vector<4x1xf32>
    %11 = arith.mulf %7, %10 : vector<4x1xf32>
    %12 = arith.mulf %9, %9 : vector<4x1xf32>
    %13 = arith.subf %11, %12 : vector<4x1xf32>
    %14 = math.rsqrt %13 : vector<4x1xf32>
    %c0_7 = arith.constant 0 : index
    %c0_8 = arith.constant 0 : index
    %c0_9 = arith.constant 0 : index
    %15 = vector.load %arg1[%c0_7, %c0_8, %c0_9] : memref<2x4x256xf32, #tpu.memory_space<vmem>>, vector<2x4x256xf32>
    %16 = vector.shape_cast %9 : vector<4x1xf32> to vector<1x4x1xf32>
    %17 = vector.broadcast %16 : vector<1x4x1xf32> to vector<2x4x256xf32>
    %18 = arith.subf %15, %17 : vector<2x4x256xf32>
    %19 = vector.shape_cast %14 : vector<4x1xf32> to vector<1x4x1xf32>
    %20 = vector.broadcast %19 : vector<1x4x1xf32> to vector<2x4x256xf32>
    %21 = arith.mulf %18, %20 : vector<2x4x256xf32>
    %c0_10 = arith.constant 0 : index
    %c0_11 = arith.constant 0 : index
    %c0_12 = arith.constant 0 : index
    %22 = vector.load %arg2[%c0_10, %c0_11, %c0_12] : memref<2x4x256xf32, #tpu.memory_space<vmem>>, vector<2x4x256xf32>
    tpu.vector_store %arg2[%c0_10, %c0_11, %c0_12], %21 {strides = array<i32>} : memref<2x4x256xf32, #tpu.memory_space<vmem>>, vector<2x4x256xf32>,
    return
  }
  func.func @transform_0(%arg0: i32) -> (i32, i32, i32) {
    %c0_i32 = arith.constant 0 : i32
    %c0_i32_0 = arith.constant 0 : i32
    %c0_i32_1 = arith.constant 0 : i32
    return %c0_i32, %arg0, %c0_i32_0 : i32, i32, i32
  }
  func.func @transform_1(%arg0: i32) -> (i32, i32, i32) {
    %c0_i32 = arith.constant 0 : i32
    %c0_i32_0 = arith.constant 0 : i32
    %c0_i32_1 = arith.constant 0 : i32
    return %c0_i32, %arg0, %c0_i32_0 : i32, i32, i32
  }
}

</mosaic_0001>

<llo_original>
// kernel: tpu_custom_call.1
$region0: #{tpu_custom_call.1}
  #allocation0 [shape = 'u32[]', space=smem, size = 0x4, offset = 0x4, fixed_abs, tag = 'smem constant byte address 0x4 - core index']
  #allocation1 [shape = 'u32[72,128]{1,0:T(1,128)}', space=vmem, size = 0x9000, scoped, tag = 'internal scratch']
  %s0 = inlined_call_operand.hbm [shape: f32[2,4,256], index: 0, kind: input, shape index: {}]
  %s1 = inlined_call_operand.hbm [shape: f32[2,4,256], index: 1, kind: output, shape index: {}]
  %s2 = sld [smem:[#allocation0]]
  $region18: #{tpu_custom_call.1} parent=0
    _
  %s4 = ssub.s32 1, %s2
  %s5 = scalar_select 0, %s4, %s2
  $region1: #{tpu_custom_call.1} parent=0
    #allocation2 [shape = 'u8[8192]{0}', space=vmem, size = 0x2000, scoped, tag = 'input window, operand 0, single buffered']
    #allocation3 [shape = 's32[1]{0}', space=sflag, size = 0x4, scoped, tag = 'scoped memory for tpu_custom_call.1']
    #allocation4 [shape = 's32[1]{0}', space=sflag, size = 0x4, scoped, tag = 'scoped memory for tpu_custom_call.1']
    #allocation5 [shape = 'u8[8192]{0}', space=vmem, size = 0x2000, scoped, tag = 'output window, operand 0, single buffered']
    %6 = vsyncpa [#allocation3], 0
    %7 = vsyncpa [#allocation4], 0
    // Predicated region
    $region2: #{tpu_custom_call.1} parent=1 // pred_check
      _
    $region3: #{tpu_custom_call.1} parent=1 // pred_check_branch
      %9 = sbr.rel (0) target = $region5
    $region4: #{tpu_custom_call.1} parent=1 // pred_region
      %11 = vsyncadd [#allocation3], 0
      %s12 = sshll.u32 %s0, 4
      %s13 = int_to_ptr.hbm [resolvable:$true] %s12
      %s14 = sshll.u32 [#allocation2], 4
      %s15 = int_to_ptr.vmem [resolvable:$true] %s14
      %20 = dma.hbm_to_vmem [thread:$0]  %s13, 256, %s15, [#allocation3], 128, 128, 8
    $region5: #{tpu_custom_call.1} parent=1 // pred_fallthru
      _
    // Predicated region
    $region6: #{tpu_custom_call.1} parent=1 // pred_check
      _
    $region7: #{tpu_custom_call.1} parent=1 // pred_check_branch
      %22 = sbr.rel (0) target = $region9
    $region8: #{tpu_custom_call.1} parent=1 // pred_region
      %24 = dma.done [#allocation3], 256
    $region9: #{tpu_custom_call.1} parent=1 // pred_fallthru
      _
    %v25 = vld [vmem:[#allocation2] sm:$0xff]
    %v26 = vld [vmem:[#allocation2 + $0x8] sm:$0xff]
    %29 = vst [vmem:[#allocation1] ss:$2 sm:$0xff] %v25
    %v30 = vld.sshfl [vmem:[#allocation1] sm:$0xff pattern:$0x75316420]
    %v31 = vld.sshfl [vmem:[#allocation1 + $0x8] sm:$0xff pattern:$0x75316420]
    %s32 = scalar_lea.vmem [#allocation1], 16
    %33 = vst [vmem:[%s32] ss:$2 sm:$0xff] %v26
    %v34 = vld.sshfl [vmem:[#allocation1 + $0x10] sm:$0xff pattern:$0x75316420]
    %v35 = vld.sshfl [vmem:[#allocation1 + $0x18] sm:$0xff pattern:$0x75316420]
    %vm40 = vcmask 1043456
    %v41 = vsel %vm40, %v30, 0.0
    %v42 = vsel %vm40, %v34, 0.0
    %v43 = vadd.f32 %v41, %v42
    %v44 = vsel %vm40, %v31, 0.0
    %v45 = vsel %vm40, %v35, 0.0
    %v46 = vadd.f32 %v44, %v45
    %v47 = vmul.f32 %v25, %v25
    %v48 = vmul.f32 %v26, %v26
    %51 = vst [vmem:[#allocation1] ss:$2 sm:$0xff] %v47
    %v52 = vld.sshfl [vmem:[#allocation1] sm:$0xff pattern:$0x75316420]
    %v53 = vld.sshfl [vmem:[#allocation1 + $0x8] sm:$0xff pattern:$0x75316420]
    %s54 = scalar_lea.vmem [#allocation1], 16
    %55 = vst [vmem:[%s54] ss:$2 sm:$0xff] %v48
    %v56 = vld.sshfl [vmem:[#allocation1 + $0x10] sm:$0xff pattern:$0x75316420]
    %v57 = vld.sshfl [vmem:[#allocation1 + $0x18] sm:$0xff pattern:$0x75316420]
    %v62 = vsel %vm40, %v52, 0.0
    %v63 = vsel %vm40, %v56, 0.0
    %v64 = vadd.f32 %v62, %v63
    %v65 = vsel %vm40, %v53, 0.0
    %v66 = vsel %vm40, %v57, 0.0
    %v67 = vadd.f32 %v65, %v66
    %v68 = vsel %vm40, %v43, 0.0
    %v69 = vsel %vm40, %v46, 0.0
    %v70 = vadd.f32 %v68, %v69
    %71 = vadd.xlane.f32.xlu0 %v70
    %v72 = vpop.xlane.xlu0 %71
    %v73 = vsel %vm40, %v64, 0.0
    %v74 = vsel %vm40, %v67, 0.0
    %v75 = vadd.f32 %v73, %v74
    %76 = vadd.xlane.f32.xlu0 %v75
    %v77 = vpop.xlane.xlu0 %76
    %v78 = vmul.f32 %v72, 0.001953125
    %v79 = vmul.f32 %v77, 0.001953125
    %v80 = vmul.f32 %v78, %v78
    %v81 = vsub.f32 %v79, %v80
    %v82 = vrsqrt.pop %v81
    %v83 = vmul.f32 %v82, %v81
    %v84 = vmul.f32 %v83, %v82
    %v85 = vmul.f32 0.5, %v84
    %v86 = vsub.f32 1.5, %v85
    %v87 = vmul.f32 %v82, %v86
    %vm88 = vweird.f32 %v81
    %vm89 = vweird.f32 %v82
    %vm90 = vmor %vm88, %vm89
    %v91 = vsel %vm90, %v82, %v87
    %v94 = vunpack.c.l.s4 839922192
    %v95 = vunpack.c.0.s8 %v94
    %v96 = vperm.slane %v78, %v95
    %v98 = vsub.f32 %v25, %v96
    %v99 = vsub.f32 %v26, %v96
    %v102 = vunpack.c.l.s4 839922192
    %v103 = vunpack.c.0.s8 %v102
    %v104 = vperm.slane %v91, %v103
    %v106 = vmul.f32 %v98, %v104
    %v107 = vmul.f32 %v99, %v104
    %108 = vst [vmem:[#allocation5] sm:$0xff] %v106
    %109 = vst [vmem:[#allocation5 + $0x8] sm:$0xff] %v107
    // Predicated region
    $region10: #{tpu_custom_call.1} parent=1 // pred_check
      _
    $region11: #{tpu_custom_call.1} parent=1 // pred_check_branch
      %111 = sbr.rel (0) target = $region13
    $region12: #{tpu_custom_call.1} parent=1 // pred_region
      %113 = vsyncadd [#allocation4], 0
      %s114 = sshll.u32 [#allocation5], 4
      %s115 = int_to_ptr.vmem [resolvable:$true] %s114
      %s116 = sshll.u32 %s1, 4
      %s117 = int_to_ptr.hbm [resolvable:$true] %s116
      %122 = dma.vmem_to_hbm [thread:$0]  %s115, 256, %s117, [#allocation4], 128, 128, 8
    $region13: #{tpu_custom_call.1} parent=1 // pred_fallthru
      _
    // Predicated region
    $region14: #{tpu_custom_call.1} parent=1 // pred_check
      _
    $region15: #{tpu_custom_call.1} parent=1 // pred_check_branch
      %124 = sbr.rel (0) target = $region17
    $region16: #{tpu_custom_call.1} parent=1 // pred_region
      %126 = dma.done [#allocation4], 256
    $region17: #{tpu_custom_call.1} parent=1 // pred_fallthru
      _
    %127 = vsyncpa [#allocation3], 1
    %128 = vsyncpa [#allocation4], 1

</llo_original>
